<compile_context>
chip_gen: v5e
topology: v5e:2x2
jax: 0.10.0
libtpu: 0.0.40
codegen_flags: <defaults>
</compile_context>

<pallas_src>
import functools

import jax
import jax.numpy as jnp
from jax import lax
from jax.experimental import pallas as pl
from jax.experimental.pallas import tpu as pltpu


def _hwindow_min(rows, k, p, wt, masks):
    """Horizontal windowed min/argmin with zero padding at segment borders.

    rows:  (R, wt) tile; one row may hold several `w`-wide batch segments.
    masks: per-kw (1, wt) bool lane masks (True = in-bounds); None for dx == 0.
    Returns (best, kw_idx); ties resolved to the smallest kw (unfold order).
    """
    zero = jnp.array(0, rows.dtype)
    best = None
    bidx = None
    for kw in range(k):
        dx = kw - p
        if dx == 0:
            cand = rows
        else:
            # Lane rotation runs on the XLU (co-issues with the VALU work);
            # wrapped / out-of-segment lanes become the zero-padding value.
            cand = pltpu.roll(rows, shift=(-dx) % wt, axis=1)
            cand = jnp.where(masks[kw], cand, zero)
        if best is None:
            best = cand
            bidx = jnp.zeros(rows.shape, dtype=jnp.int32)
        else:
            take = cand < best            # strict '<': smallest kw wins ties
            best = jnp.where(take, cand, best)
            bidx = jnp.where(take, jnp.int32(kw), bidx)
    return best, bidx


def _wbc_kernel(*refs, k, p, th, wt, wv, ht, use_halo):
    if use_halo:
        (x_ref, thalo_ref, bhalo_ref,
         top_ref, mask_ref, hval_ref, hidx_ref) = refs
    else:
        x_ref, top_ref, mask_ref, hval_ref, hidx_ref = refs
        thalo_ref = bhalo_ref = None

    t = pl.program_id(1)    # row tile
    c = pl.program_id(2)    # channel (innermost reduction / accumulator axis)
    kk = k * k

    # Per-kw lane boundary masks from a (1, wt) iota (not a full-tile iota);
    # jnp.where broadcasts the 1-sublane condition over the rows.
    col = lax.broadcasted_iota(jnp.int32, (1, wt), 1)
    if wt != wv:
        # Segment-local column when the batch is folded into the lane dim.
        if (wv & (wv - 1)) == 0:
            col = jnp.bitwise_and(col, wv - 1)
        else:
            col = col % wv
    masks = [None] * k
    for kw in range(k):
        dx = kw - p
        if dx > 0:
            masks[kw] = col < (wv - dx)
        elif dx < 0:
            masks[kw] = col >= (-dx)

    def hmin(rows):
        return _hwindow_min(rows, k, p, wt, masks)

    # ---- Pass 1: horizontal min/argmin, staged into a row-padded scratch so
    #      pass 2 uses cheap sublane-offset loads (no vertical shuffles).
    hb, hi = hmin(x_ref[0, 0])
    hval_ref[p:p + th, :] = hb
    hidx_ref[p:p + th, :] = hi

    if p > 0:
        zv = jnp.zeros((p, wt), dtype=hval_ref.dtype)
        zi = jnp.zeros((p, wt), dtype=jnp.int32)
        if use_halo:
            # Halo rows are real rows from the neighbouring tiles except at the
            # image border, where they are unfold's zero padding.  The border
            # cases are scalar-predicated (pl.when) and, being channel
            # invariant, written only at c == 0 (scratch persists).
            @pl.when(t > 0)
            def _():
                hb_t, hi_t = hmin(thalo_ref[0, 0, 8 - p:8, :])
                hval_ref[0:p, :] = hb_t
                hidx_ref[0:p, :] = hi_t

            @pl.when(jnp.logical_and(t == 0, c == 0))
            def _():
                hval_ref[0:p, :] = zv
                hidx_ref[0:p, :] = zi

            @pl.when(t < ht - 1)
            def _():
                hb_b, hi_b = hmin(bhalo_ref[0, 0, 0:p, :])
                hval_ref[p + th:, :] = hb_b
                hidx_ref[p + th:, :] = hi_b

            @pl.when(jnp.logical_and(t == ht - 1, c == 0))
            def _():
                hval_ref[p + th:, :] = zv
                hidx_ref[p + th:, :] = zi
        else:
            # Single row tile: the vertical halo is pure zero padding and is
            # channel invariant -> write it only once per (b, t).
            @pl.when(c == 0)
            def _():
                hval_ref[0:p, :] = zv
                hidx_ref[0:p, :] = zi
                hval_ref[p + th:, :] = zv
                hidx_ref[p + th:, :] = zi

    # ---- Pass 2: vertical min over kh.  Only the in-channel flat index
    #      kh*k + kw is carried in the loop; the c*k*k term is hoisted out and
    #      folded into the channel merge below.
    # TODO(synk): on v5e (1 vst slot) consider fusing pass 1/2 per 8-row strip
    # to trade scratch stores for duplicated horizontal-min rows.
    best = None
    bflat = None
    for kh in range(k):
        v = hval_ref[kh:kh + th, :]
        f = hidx_ref[kh:kh + th, :]
        if kh > 0:
            f = f + (kh * k)
        if best is None:
            best, bflat = v, f
        else:
            take = v < best               # strict '<': smaller kh wins ties
            best = jnp.where(take, v, best)
            bflat = jnp.where(take, f, bflat)

    # ---- Merge with the running best across channels.  The output blocks are
    #      revisited across the innermost grid axis, stay resident in VMEM and
    #      double as the min/argmin accumulators.
    @pl.when(c == 0)
    def _():
        top_ref[0, 0] = best
        mask_ref[0, 0] = bflat            # c*k*k == 0 for the first channel

    @pl.when(c > 0)
    def _():
        cur_v = top_ref[0, 0]
        cur_i = mask_ref[0, 0]
        take = best < cur_v               # strict '<': earlier channel wins
        top_ref[0, 0] = jnp.where(take, best, cur_v)
        mask_ref[0, 0] = jnp.where(take, bflat + c * kk, cur_i)


def _pick_row_tile(h, wt, p, n_eff, itemsize, target=512, budget=40 * 1024 * 1024):
    """Choose (row_tile, padded_h).

    row_tile is a multiple of 8 (or the whole image), sized so one grid step's
    resident VMEM (2x input + 2x each output + scratch) stays under `budget`,
    preferring large (up to 512-row) tiles to amortize the ~0.35us/step
    pipeline overhead and the 2x8-row halo re-reads.  With no batch
    parallelism (n_eff == 1) at least two row tiles are produced so both v7x
    TensorCores get work.  padded_h > h means the caller zero-pads H (the pad
    rows reproduce nn.Unfold's zero halo; padded output rows are sliced off).
    """
    def up8(v):
        return -(-v // 8) * 8

    per_row = max(1, wt * (5 * itemsize + 12))
    cap = max(8, min(target, (budget // per_row) // 8 * 8))
    if p > 8 or h <= 8:
        # Halo machinery needs k//2 <= 8; tiny images: a single tile.
        # TODO(synk): k > 17 on very large images may exceed the VMEM budget.
        return h, h

    limit = cap if n_eff > 1 else max(8, min(cap, (h // 2) // 8 * 8))
    best = 0
    for d in range(8, min(limit, h) + 1, 8):
        if h % d == 0:
            best = d
    if best and (best * 4 >= min(limit, h) or best >= 256):
        return best, h                    # good divisor: no padding needed
    if h <= cap and n_eff > 1:
        return h, h                       # one step; batch is still parallel

    # Ragged fallback: zero-pad H to a multiple of an 8-aligned tile.
    n_tiles = max(2 if n_eff == 1 else 1, -(-h // limit))
    th = up8(-(-h // n_tiles))
    while th > limit:
        n_tiles += 1
        th = up8(-(-h // n_tiles))
    return th, th * n_tiles


def wbc_prior_layer(x, kernel_size, *, row_tile=None):
    """Pallas TPU forward of WBCPriorLayer.

    Returns (top_data, mask): the windowed (C*k*k) min of the zero-padded
    input and the flat argmin index c*k*k + kh*k + kw, both (N, 1, H, W).
    mask is int32 (PyTorch returns int64).
    """
    if kernel_size < 1 or kernel_size % 2 != 1:
        raise ValueError("kernel_size must be odd to preserve spatial size")
    n, n_ch, h, w = x.shape
    k = kernel_size
    p = k // 2
    if n_ch * k * k >= 2 ** 31:
        raise ValueError("flat window index does not fit int32")
    # TODO(synk): emit mask as int16/uint8 when C*k*k allows it (cuts HBM
    # writes, biggest relative win on v5e); kept int32 to stay near torch.
    # TODO(synk): bf16 inputs would halve input HBM reads (needs 16-row-aligned
    # tiles); only float32 is exercised here.

    # Lane density: for narrow images fold the batch into the lane dimension
    # (layout plumbing only; the per-kw boundary masks use the segment width).
    fold_batch = (w < 128) and (n > 1) and (n * w <= 8192)
    if fold_batch:
        xk = jnp.transpose(x, (1, 2, 0, 3)).reshape(1, n_ch, h, n * w)
        n_eff, wt = 1, n * w
    else:
        xk = x
        n_eff, wt = n, w

    # Row tiling (and optional zero-padding of H for ragged heights).
    if row_tile is None:
        th, h_used = _pick_row_tile(h, wt, p, n_eff, x.dtype.itemsize)
    else:
        th, h_used = int(row_tile), h
        if h % th != 0:
            raise ValueError(f"row_tile={th} must divide H={h}")
    if h_used != h:
        xk = jnp.pad(xk, ((0, 0), (0, 0), (0, h_used - h), (0, 0)))
    ht = h_used // th
    use_halo = (p > 0) and (ht > 1)
    if use_halo and (th % 8 != 0 or p > 8):
        raise ValueError("multi-tile path needs row_tile % 8 == 0 and k//2 <= 8")

    in_specs = [pl.BlockSpec((1, 1, th, wt), lambda b, t, c: (b, c, t, 0))]
    args = [xk]
    if use_halo:
        tb = th // 8               # row tile measured in 8-row halo blocks
        n_hb = h_used // 8         # number of 8-row blocks in the image
        in_specs.append(pl.BlockSpec(
            (1, 1, 8, wt),
            lambda b, t, c, tb=tb: (b, c, jnp.maximum(t * tb - 1, 0), 0)))
        in_specs.append(pl.BlockSpec(
            (1, 1, 8, wt),
            lambda b, t, c, tb=tb, n_hb=n_hb:
                (b, c, jnp.minimum((t + 1) * tb, n_hb - 1), 0)))
        args += [xk, xk]

    kernel = functools.partial(
        _wbc_kernel, k=k, p=p, th=th, wt=wt, wv=w, ht=ht, use_halo=use_halo)

    top, mask = pl.pallas_call(
        kernel,
        out_shape=(
            jax.ShapeDtypeStruct((n_eff, 1, h_used, wt), x.dtype),
            jax.ShapeDtypeStruct((n_eff, 1, h_used, wt), jnp.int32),
        ),
        grid_spec=pltpu.PrefetchScalarGridSpec(
            num_scalar_prefetch=0,
            grid=(n_eff, ht, n_ch),
            in_specs=in_specs,
            out_specs=[
                pl.BlockSpec((1, 1, th, wt), lambda b, t, c: (b, 0, t, 0)),
                pl.BlockSpec((1, 1, th, wt), lambda b, t, c: (b, 0, t, 0)),
            ],
            scratch_shapes=[
                pltpu.VMEM((th + 2 * p, wt), x.dtype),
                pltpu.VMEM((th + 2 * p, wt), jnp.int32),
            ],
        ),
        compiler_params=pltpu.CompilerParams(
            dimension_semantics=("parallel", "parallel", "arbitrary"),
            # Tiles are budgeted to ~40 MB resident, so 48 MB fits v7x's
            # 64 MiB physical VMEM with headroom; plenty of slack on v5e/v6e.
            vmem_limit_bytes=48 * 1024 * 1024,
        ),
    )(*args)

    if h_used != h:
        top = top[:, :, :h, :]
        mask = mask[:, :, :h, :]
    if fold_batch:
        top = top.reshape(h, n, w).transpose(1, 0, 2).reshape(n, 1, h, w)
        mask = mask.reshape(h, n, w).transpose(1, 0, 2).reshape(n, 1, h, w)
    return top, mask


def _reference(x, kernel_size):
    """Plain-JAX reproduction of F.unfold(k, pad=k//2) + min(dim=1)."""
    n, c, h, w = x.shape
    p = kernel_size // 2
    xp = jnp.pad(x, ((0, 0), (0, 0), (p, p), (p, p)))
    cols = []
    for ci in range(c):
        for kh in range(kernel_size):
            for kw in range(kernel_size):
                cols.append(xp[:, ci, kh:kh + h, kw:kw + w])
    stacked = jnp.stack(cols, axis=1)                  # (N, C*k*k, H, W)
    top = jnp.min(stacked, axis=1, keepdims=True)
    idx = jnp.argmin(stacked, axis=1, keepdims=True).astype(jnp.int32)
    return top, idx


if __name__ == "__main__":
    key = jax.random.PRNGKey(0)

    # (shape, kernel_size, row_tile): exercise batch-folded lanes + halo tiles,
    # the single-tile path, k=5, full-lane W=128, and the ragged-H fallback.
    cases = [
        ((2, 4, 16, 16), 3, None),   # fold batch into lanes, 2 row tiles
        ((2, 4, 16, 16), 3, 16),     # single row tile (zero halo at c==0 only)
        ((2, 4, 16, 16), 5, 8),      # k=5 (p=2) halo path
        ((1, 3, 24, 128), 3, None),  # lane-dense W=128, no fold, 3 row tiles
        ((2, 3, 20, 16), 3, None),   # ragged H -> zero-padded to 24 rows
    ]
    for shape, ks, rt in cases:
        key, sub = jax.random.split(key)
        x = jax.random.uniform(sub, shape, dtype=jnp.float32)
        top, mask = wbc_prior_layer(x, ks, row_tile=rt)
        jax.block_until_ready((top, mask))
        ref_top, ref_mask = _reference(x, ks)
        nb, _, hh, ww = shape
        assert top.shape == (nb, 1, hh, ww) and mask.shape == (nb, 1, hh, ww)
        assert jnp.array_equal(top, ref_top), ("top mismatch", shape, ks, rt)
        assert jnp.array_equal(mask, ref_mask), ("mask mismatch", shape, ks, rt)

    print("KERNEL_OK")
</pallas_src>

<mosaic_0001>
module attributes {stable_mosaic.version = 11 : i64} {
  func.func @_wbc_kernel(%arg0: i32, %arg1: i32, %arg2: i32, %arg3: memref<1x1x8x32xf32, #tpu.memory_space<vmem>>, %arg4: memref<1x1x8x32xf32, #tpu.memory_space<vmem>>, %arg5: memref<1x1x8x32xf32, #tpu.memory_space<vmem>>, %arg6: memref<1x1x8x32xf32, #tpu.memory_space<vmem>>, %arg7: memref<1x1x8x32xi32, #tpu.memory_space<vmem>>, %arg8: memref<10x32xf32, #tpu.memory_space<vmem>>, %arg9: memref<10x32xi32, #tpu.memory_space<vmem>>) attributes {dimension_semantics = [#tpu.dimension_semantics<parallel>, #tpu.dimension_semantics<parallel>, #tpu.dimension_semantics<arbitrary>], iteration_bounds = array<i64: 1, 2, 4>, scalar_prefetch = 0 : i64, scratch_operands = 2 : i64, tpu.core_type = #tpu.core_type<tc>, window_params = [{transform_indices = @transform_0, window_bounds = array<i64: 1, 1, 8, 32>}, {transform_indices = @transform_1, window_bounds = array<i64: 1, 1, 8, 32>}, {transform_indices = @transform_2, window_bounds = array<i64: 1, 1, 8, 32>}, {transform_indices = @transform_3, window_bounds = array<i64: 1, 1, 8, 32>}, {transform_indices = @transform_4, window_bounds = array<i64: 1, 1, 8, 32>}]} {
    %0 = tpu.iota {dimensions = array<i32: 1>} : vector<1x32xi32>
    %c15_i32 = arith.constant 15 : i32
    %1 = vector.broadcast %c15_i32 : i32 to vector<1x32xi32>
    %2 = arith.andi %0, %1 : vector<1x32xi32>
    %c1_i32 = arith.constant 1 : i32
    %3 = vector.broadcast %c1_i32 : i32 to vector<1x32xi32>
    %4 = arith.cmpi sge, %2, %3 : vector<1x32xi32>
    %c15_i32_0 = arith.constant 15 : i32
    %5 = vector.broadcast %c15_i32_0 : i32 to vector<1x32xi32>
    %6 = arith.cmpi slt, %2, %5 : vector<1x32xi32>
    %c0 = arith.constant 0 : index
    %c0_1 = arith.constant 0 : index
    %c0_2 = arith.constant 0 : index
    %c0_3 = arith.constant 0 : index
    %7 = vector.load %arg3[%c0, %c0_1, %c0_2, %c0_3] : memref<1x1x8x32xf32, #tpu.memory_space<vmem>>, vector<1x1x8x32xf32>
    %8 = vector.shape_cast %7 : vector<1x1x8x32xf32> to vector<8x32xf32>
    %c1_i32_4 = arith.constant 1 : i32
    %9 = tpu.dynamic_rotate %8 by %c1_i32_4 dim 1 : vector<8x32xf32>, i32 -> vector<8x32xf32>
    %cst = arith.constant 0.000000e+00 : f32
    %10 = vector.shape_cast %4 : vector<1x32xi1> to vector<1x32xi1>
    %11 = vector.broadcast %10 : vector<1x32xi1> to vector<8x32xi1>
    %12 = vector.broadcast %cst : f32 to vector<8x32xf32>
    %13 = arith.select %11, %9, %12 : vector<8x32xi1>, vector<8x32xf32>
    %c0_i32 = arith.constant 0 : i32
    %14 = vector.broadcast %c0_i32 : i32 to vector<8x32xi32>
    %15 = arith.cmpf olt, %8, %13 : vector<8x32xf32>
    %16 = arith.select %15, %8, %13 : vector<8x32xi1>, vector<8x32xf32>
    %c1_i32_5 = arith.constant 1 : i32
    %17 = vector.broadcast %c1_i32_5 : i32 to vector<8x32xi32>
    %18 = arith.select %15, %17, %14 : vector<8x32xi1>, vector<8x32xi32>
    %c31_i32 = arith.constant 31 : i32
    %19 = tpu.dynamic_rotate %8 by %c31_i32 dim 1 : vector<8x32xf32>, i32 -> vector<8x32xf32>
    %cst_6 = arith.constant 0.000000e+00 : f32
    %20 = vector.shape_cast %6 : vector<1x32xi1> to vector<1x32xi1>
    %21 = vector.broadcast %20 : vector<1x32xi1> to vector<8x32xi1>
    %22 = vector.broadcast %cst_6 : f32 to vector<8x32xf32>
    %23 = arith.select %21, %19, %22 : vector<8x32xi1>, vector<8x32xf32>
    %24 = arith.cmpf olt, %23, %16 : vector<8x32xf32>
    %25 = arith.select %24, %23, %16 : vector<8x32xi1>, vector<8x32xf32>
    %c2_i32 = arith.constant 2 : i32
    %26 = vector.broadcast %c2_i32 : i32 to vector<8x32xi32>
    %27 = arith.select %24, %26, %18 : vector<8x32xi1>, vector<8x32xi32>
    %c1 = arith.constant 1 : index
    %c0_7 = arith.constant 0 : index
    %28 = vector.load %arg8[%c1, %c0_7] : memref<10x32xf32, #tpu.memory_space<vmem>>, vector<8x32xf32>
    tpu.vector_store %arg8[%c1, %c0_7], %25 {strides = array<i32>} : memref<10x32xf32, #tpu.memory_space<vmem>>, vector<8x32xf32>,
    %c1_8 = arith.constant 1 : index
    %c0_9 = arith.constant 0 : index
    %29 = vector.load %arg9[%c1_8, %c0_9] : memref<10x32xi32, #tpu.memory_space<vmem>>, vector<8x32xi32>
    tpu.vector_store %arg9[%c1_8, %c0_9], %27 {strides = array<i32>} : memref<10x32xi32, #tpu.memory_space<vmem>>, vector<8x32xi32>,
    %cst_10 = arith.constant 0.000000e+00 : f32
    %30 = vector.broadcast %cst_10 : f32 to vector<1x32xf32>
    %c0_i32_11 = arith.constant 0 : i32
    %31 = vector.broadcast %c0_i32_11 : i32 to vector<1x32xi32>
    %c0_i32_12 = arith.constant 0 : i32
    %32 = arith.cmpi sgt, %arg1, %c0_i32_12 : i32
    %33 = arith.extui %32 : i1 to i32
    %c0_i32_13 = arith.constant 0 : i32
    %34 = arith.cmpi ne, %33, %c0_i32_13 : i32
    scf.if %34 {
      %c0_37 = arith.constant 0 : index
      %c0_38 = arith.constant 0 : index
      %c7 = arith.constant 7 : index
      %c0_39 = arith.constant 0 : index
      %70 = vector.load %arg4[%c0_37, %c0_38, %c7, %c0_39] : memref<1x1x8x32xf32, #tpu.memory_space<vmem>>, vector<1x1x1x32xf32>
      %71 = vector.shape_cast %70 : vector<1x1x1x32xf32> to vector<1x32xf32>
      %c1_i32_40 = arith.constant 1 : i32
      %72 = tpu.dynamic_rotate %71 by %c1_i32_40 dim 1 : vector<1x32xf32>, i32 -> vector<1x32xf32>
      %cst_41 = arith.constant 0.000000e+00 : f32
      %73 = vector.broadcast %cst_41 : f32 to vector<1x32xf32>
      %74 = arith.select %4, %72, %73 : vector<1x32xi1>, vector<1x32xf32>
      %c0_i32_42 = arith.constant 0 : i32
      %75 = vector.broadcast %c0_i32_42 : i32 to vector<1x32xi32>
      %76 = arith.cmpf olt, %71, %74 : vector<1x32xf32>
      %77 = arith.select %76, %71, %74 : vector<1x32xi1>, vector<1x32xf32>
      %c1_i32_43 = arith.constant 1 : i32
      %78 = vector.broadcast %c1_i32_43 : i32 to vector<1x32xi32>
      %79 = arith.select %76, %78, %75 : vector<1x32xi1>, vector<1x32xi32>
      %c31_i32_44 = arith.constant 31 : i32
      %80 = tpu.dynamic_rotate %71 by %c31_i32_44 dim 1 : vector<1x32xf32>, i32 -> vector<1x32xf32>
      %cst_45 = arith.constant 0.000000e+00 : f32
      %81 = vector.broadcast %cst_45 : f32 to vector<1x32xf32>
      %82 = arith.select %6, %80, %81 : vector<1x32xi1>, vector<1x32xf32>
      %83 = arith.cmpf olt, %82, %77 : vector<1x32xf32>
      %84 = arith.select %83, %82, %77 : vector<1x32xi1>, vector<1x32xf32>
      %c2_i32_46 = arith.constant 2 : i32
      %85 = vector.broadcast %c2_i32_46 : i32 to vector<1x32xi32>
      %86 = arith.select %83, %85, %79 : vector<1x32xi1>, vector<1x32xi32>
      %c0_47 = arith.constant 0 : index
      %c0_48 = arith.constant 0 : index
      %87 = vector.load %arg8[%c0_47, %c0_48] : memref<10x32xf32, #tpu.memory_space<vmem>>, vector<1x32xf32>
      tpu.vector_store %arg8[%c0_47, %c0_48], %84 {strides = array<i32>} : memref<10x32xf32, #tpu.memory_space<vmem>>, vector<1x32xf32>,
      %c0_49 = arith.constant 0 : index
      %c0_50 = arith.constant 0 : index
      %88 = vector.load %arg9[%c0_49, %c0_50] : memref<10x32xi32, #tpu.memory_space<vmem>>, vector<1x32xi32>
      tpu.vector_store %arg9[%c0_49, %c0_50], %86 {strides = array<i32>} : memref<10x32xi32, #tpu.memory_space<vmem>>, vector<1x32xi32>,
    } else {
    }
    %c0_i32_14 = arith.constant 0 : i32
    %35 = arith.cmpi eq, %arg1, %c0_i32_14 : i32
    %c0_i32_15 = arith.constant 0 : i32
    %36 = arith.cmpi eq, %arg2, %c0_i32_15 : i32
    %37 = arith.andi %35, %36 : i1
    %38 = arith.extui %37 : i1 to i32
    %c0_i32_16 = arith.constant 0 : i32
    %39 = arith.cmpi ne, %38, %c0_i32_16 : i32
    scf.if %39 {
      %c0_37 = arith.constant 0 : index
      %c0_38 = arith.constant 0 : index
      %70 = vector.load %arg8[%c0_37, %c0_38] : memref<10x32xf32, #tpu.memory_space<vmem>>, vector<1x32xf32>
      tpu.vector_store %arg8[%c0_37, %c0_38], %30 {strides = array<i32>} : memref<10x32xf32, #tpu.memory_space<vmem>>, vector<1x32xf32>,
      %c0_39 = arith.constant 0 : index
      %c0_40 = arith.constant 0 : index
      %71 = vector.load %arg9[%c0_39, %c0_40] : memref<10x32xi32, #tpu.memory_space<vmem>>, vector<1x32xi32>
      tpu.vector_store %arg9[%c0_39, %c0_40], %31 {strides = array<i32>} : memref<10x32xi32, #tpu.memory_space<vmem>>, vector<1x32xi32>,
    } else {
    }
    %c1_i32_17 = arith.constant 1 : i32
    %40 = arith.cmpi slt, %arg1, %c1_i32_17 : i32
    %41 = arith.extui %40 : i1 to i32
    %c0_i32_18 = arith.constant 0 : i32
    %42 = arith.cmpi ne, %41, %c0_i32_18 : i32
    scf.if %42 {
      %c0_37 = arith.constant 0 : index
      %c0_38 = arith.constant 0 : index
      %c0_39 = arith.constant 0 : index
      %c0_40 = arith.constant 0 : index
      %70 = vector.load %arg5[%c0_37, %c0_38, %c0_39, %c0_40] : memref<1x1x8x32xf32, #tpu.memory_space<vmem>>, vector<1x1x1x32xf32>
      %71 = vector.shape_cast %70 : vector<1x1x1x32xf32> to vector<1x32xf32>
      %c1_i32_41 = arith.constant 1 : i32
      %72 = tpu.dynamic_rotate %71 by %c1_i32_41 dim 1 : vector<1x32xf32>, i32 -> vector<1x32xf32>
      %cst_42 = arith.constant 0.000000e+00 : f32
      %73 = vector.broadcast %cst_42 : f32 to vector<1x32xf32>
      %74 = arith.select %4, %72, %73 : vector<1x32xi1>, vector<1x32xf32>
      %c0_i32_43 = arith.constant 0 : i32
      %75 = vector.broadcast %c0_i32_43 : i32 to vector<1x32xi32>
      %76 = arith.cmpf olt, %71, %74 : vector<1x32xf32>
      %77 = arith.select %76, %71, %74 : vector<1x32xi1>, vector<1x32xf32>
      %c1_i32_44 = arith.constant 1 : i32
      %78 = vector.broadcast %c1_i32_44 : i32 to vector<1x32xi32>
      %79 = arith.select %76, %78, %75 : vector<1x32xi1>, vector<1x32xi32>
      %c31_i32_45 = arith.constant 31 : i32
      %80 = tpu.dynamic_rotate %71 by %c31_i32_45 dim 1 : vector<1x32xf32>, i32 -> vector<1x32xf32>
      %cst_46 = arith.constant 0.000000e+00 : f32
      %81 = vector.broadcast %cst_46 : f32 to vector<1x32xf32>
      %82 = arith.select %6, %80, %81 : vector<1x32xi1>, vector<1x32xf32>
      %83 = arith.cmpf olt, %82, %77 : vector<1x32xf32>
      %84 = arith.select %83, %82, %77 : vector<1x32xi1>, vector<1x32xf32>
      %c2_i32_47 = arith.constant 2 : i32
      %85 = vector.broadcast %c2_i32_47 : i32 to vector<1x32xi32>
      %86 = arith.select %83, %85, %79 : vector<1x32xi1>, vector<1x32xi32>
      %c9 = arith.constant 9 : index
      %c0_48 = arith.constant 0 : index
      %87 = vector.load %arg8[%c9, %c0_48] : memref<10x32xf32, #tpu.memory_space<vmem>>, vector<1x32xf32>
      tpu.vector_store %arg8[%c9, %c0_48], %84 {strides = array<i32>} : memref<10x32xf32, #tpu.memory_space<vmem>>, vector<1x32xf32>,
      %c9_49 = arith.constant 9 : index
      %c0_50 = arith.constant 0 : index
      %88 = vector.load %arg9[%c9_49, %c0_50] : memref<10x32xi32, #tpu.memory_space<vmem>>, vector<1x32xi32>
      tpu.vector_store %arg9[%c9_49, %c0_50], %86 {strides = array<i32>} : memref<10x32xi32, #tpu.memory_space<vmem>>, vector<1x32xi32>,
    } else {
    }
    %c1_i32_19 = arith.constant 1 : i32
    %43 = arith.cmpi eq, %arg1, %c1_i32_19 : i32
    %c0_i32_20 = arith.constant 0 : i32
    %44 = arith.cmpi eq, %arg2, %c0_i32_20 : i32
    %45 = arith.andi %43, %44 : i1
    %46 = arith.extui %45 : i1 to i32
    %c0_i32_21 = arith.constant 0 : i32
    %47 = arith.cmpi ne, %46, %c0_i32_21 : i32
    scf.if %47 {
      %c9 = arith.constant 9 : index
      %c0_37 = arith.constant 0 : index
      %70 = vector.load %arg8[%c9, %c0_37] : memref<10x32xf32, #tpu.memory_space<vmem>>, vector<1x32xf32>
      tpu.vector_store %arg8[%c9, %c0_37], %30 {strides = array<i32>} : memref<10x32xf32, #tpu.memory_space<vmem>>, vector<1x32xf32>,
      %c9_38 = arith.constant 9 : index
      %c0_39 = arith.constant 0 : index
      %71 = vector.load %arg9[%c9_38, %c0_39] : memref<10x32xi32, #tpu.memory_space<vmem>>, vector<1x32xi32>
      tpu.vector_store %arg9[%c9_38, %c0_39], %31 {strides = array<i32>} : memref<10x32xi32, #tpu.memory_space<vmem>>, vector<1x32xi32>,
    } else {
    }
    %c0_22 = arith.constant 0 : index
    %c0_23 = arith.constant 0 : index
    %48 = vector.load %arg8[%c0_22, %c0_23] : memref<10x32xf32, #tpu.memory_space<vmem>>, vector<8x32xf32>
    %c0_24 = arith.constant 0 : index
    %c0_25 = arith.constant 0 : index
    %49 = vector.load %arg9[%c0_24, %c0_25] : memref<10x32xi32, #tpu.memory_space<vmem>>, vector<8x32xi32>
    %c1_26 = arith.constant 1 : index
    %c0_27 = arith.constant 0 : index
    %50 = vector.load %arg8[%c1_26, %c0_27] : memref<10x32xf32, #tpu.memory_space<vmem>>, vector<8x32xf32>
    %c1_28 = arith.constant 1 : index
    %c0_29 = arith.constant 0 : index
    %51 = vector.load %arg9[%c1_28, %c0_29] : memref<10x32xi32, #tpu.memory_space<vmem>>, vector<8x32xi32>
    %c3_i32 = arith.constant 3 : i32
    %52 = vector.broadcast %c3_i32 : i32 to vector<8x32xi32>
    %53 = arith.addi %51, %52 : vector<8x32xi32>
    %54 = arith.cmpf olt, %50, %48 : vector<8x32xf32>
    %55 = arith.select %54, %50, %48 : vector<8x32xi1>, vector<8x32xf32>
    %56 = arith.select %54, %53, %49 : vector<8x32xi1>, vector<8x32xi32>
    %c2 = arith.constant 2 : index
    %c0_30 = arith.constant 0 : index
    %57 = vector.load %arg8[%c2, %c0_30] : memref<10x32xf32, #tpu.memory_space<vmem>>, vector<8x32xf32>
    %c2_31 = arith.constant 2 : index
    %c0_32 = arith.constant 0 : index
    %58 = vector.load %arg9[%c2_31, %c0_32] : memref<10x32xi32, #tpu.memory_space<vmem>>, vector<8x32xi32>
    %c6_i32 = arith.constant 6 : i32
    %59 = vector.broadcast %c6_i32 : i32 to vector<8x32xi32>
    %60 = arith.addi %58, %59 : vector<8x32xi32>
    %61 = arith.cmpf olt, %57, %55 : vector<8x32xf32>
    %62 = arith.select %61, %57, %55 : vector<8x32xi1>, vector<8x32xf32>
    %63 = arith.select %61, %60, %56 : vector<8x32xi1>, vector<8x32xi32>
    %c0_i32_33 = arith.constant 0 : i32
    %64 = arith.cmpi eq, %arg2, %c0_i32_33 : i32
    %65 = arith.extui %64 : i1 to i32
    %c0_i32_34 = arith.constant 0 : i32
    %66 = arith.cmpi ne, %65, %c0_i32_34 : i32
    scf.if %66 {
      %c0_37 = arith.constant 0 : index
      %c0_38 = arith.constant 0 : index
      %c0_39 = arith.constant 0 : index
      %c0_40 = arith.constant 0 : index
      %70 = vector.load %arg6[%c0_37, %c0_38, %c0_39, %c0_40] : memref<1x1x8x32xf32, #tpu.memory_space<vmem>>, vector<1x1x8x32xf32>
      %71 = vector.shape_cast %70 : vector<1x1x8x32xf32> to vector<8x32xf32>
      %72 = vector.shape_cast %62 : vector<8x32xf32> to vector<1x1x8x32xf32>
      tpu.vector_store %arg6[%c0_37, %c0_38, %c0_39, %c0_40], %72 {strides = array<i32>} : memref<1x1x8x32xf32, #tpu.memory_space<vmem>>, vector<1x1x8x32xf32>,
      %c0_41 = arith.constant 0 : index
      %c0_42 = arith.constant 0 : index
      %c0_43 = arith.constant 0 : index
      %c0_44 = arith.constant 0 : index
      %73 = vector.load %arg7[%c0_41, %c0_42, %c0_43, %c0_44] : memref<1x1x8x32xi32, #tpu.memory_space<vmem>>, vector<1x1x8x32xi32>
      %74 = vector.shape_cast %73 : vector<1x1x8x32xi32> to vector<8x32xi32>
      %75 = vector.shape_cast %63 : vector<8x32xi32> to vector<1x1x8x32xi32>
      tpu.vector_store %arg7[%c0_41, %c0_42, %c0_43, %c0_44], %75 {strides = array<i32>} : memref<1x1x8x32xi32, #tpu.memory_space<vmem>>, vector<1x1x8x32xi32>,
    } else {
    }
    %c0_i32_35 = arith.constant 0 : i32
    %67 = arith.cmpi sgt, %arg2, %c0_i32_35 : i32
    %68 = arith.extui %67 : i1 to i32
    %c0_i32_36 = arith.constant 0 : i32
    %69 = arith.cmpi ne, %68, %c0_i32_36 : i32
    scf.if %69 {
      %c0_37 = arith.constant 0 : index
      %c0_38 = arith.constant 0 : index
      %c0_39 = arith.constant 0 : index
      %c0_40 = arith.constant 0 : index
      %70 = vector.load %arg6[%c0_37, %c0_38, %c0_39, %c0_40] : memref<1x1x8x32xf32, #tpu.memory_space<vmem>>, vector<1x1x8x32xf32>
      %71 = vector.shape_cast %70 : vector<1x1x8x32xf32> to vector<8x32xf32>
      %c0_41 = arith.constant 0 : index
      %c0_42 = arith.constant 0 : index
      %c0_43 = arith.constant 0 : index
      %c0_44 = arith.constant 0 : index
      %72 = vector.load %arg7[%c0_41, %c0_42, %c0_43, %c0_44] : memref<1x1x8x32xi32, #tpu.memory_space<vmem>>, vector<1x1x8x32xi32>
      %73 = vector.shape_cast %72 : vector<1x1x8x32xi32> to vector<8x32xi32>
      %74 = arith.cmpf olt, %62, %71 : vector<8x32xf32>
      %75 = arith.select %74, %62, %71 : vector<8x32xi1>, vector<8x32xf32>
      %c0_45 = arith.constant 0 : index
      %c0_46 = arith.constant 0 : index
      %c0_47 = arith.constant 0 : index
      %c0_48 = arith.constant 0 : index
      %76 = vector.load %arg6[%c0_45, %c0_46, %c0_47, %c0_48] : memref<1x1x8x32xf32, #tpu.memory_space<vmem>>, vector<1x1x8x32xf32>
      %77 = vector.shape_cast %76 : vector<1x1x8x32xf32> to vector<8x32xf32>
      %78 = vector.shape_cast %75 : vector<8x32xf32> to vector<1x1x8x32xf32>
      tpu.vector_store %arg6[%c0_45, %c0_46, %c0_47, %c0_48], %78 {strides = array<i32>} : memref<1x1x8x32xf32, #tpu.memory_space<vmem>>, vector<1x1x8x32xf32>,
      %c9_i32 = arith.constant 9 : i32
      %79 = arith.muli %arg2, %c9_i32 : i32
      %80 = vector.broadcast %79 : i32 to vector<8x32xi32>
      %81 = arith.addi %63, %80 : vector<8x32xi32>
      %82 = arith.select %74, %81, %73 : vector<8x32xi1>, vector<8x32xi32>
      %c0_49 = arith.constant 0 : index
      %c0_50 = arith.constant 0 : index
      %c0_51 = arith.constant 0 : index
      %c0_52 = arith.constant 0 : index
      %83 = vector.load %arg7[%c0_49, %c0_50, %c0_51, %c0_52] : memref<1x1x8x32xi32, #tpu.memory_space<vmem>>, vector<1x1x8x32xi32>
      %84 = vector.shape_cast %83 : vector<1x1x8x32xi32> to vector<8x32xi32>
      %85 = vector.shape_cast %82 : vector<8x32xi32> to vector<1x1x8x32xi32>
      tpu.vector_store %arg7[%c0_49, %c0_50, %c0_51, %c0_52], %85 {strides = array<i32>} : memref<1x1x8x32xi32, #tpu.memory_space<vmem>>, vector<1x1x8x32xi32>,
    } else {
    }
    return
  }
  func.func @transform_0(%arg0: i32, %arg1: i32, %arg2: i32) -> (i32, i32, i32, i32) {
    %c0_i32 = arith.constant 0 : i32
    %c0_i32_0 = arith.constant 0 : i32
    return %arg0, %arg2, %arg1, %c0_i32 : i32, i32, i32, i32
  }
  func.func @transform_1(%arg0: i32, %arg1: i32, %arg2: i32) -> (i32, i32, i32, i32) {
    %c1_i32 = arith.constant 1 : i32
    %0 = arith.muli %arg1, %c1_i32 : i32
    %c1_i32_0 = arith.constant 1 : i32
    %1 = arith.subi %0, %c1_i32_0 : i32
    %c0_i32 = arith.constant 0 : i32
    %2 = arith.maxsi %1, %c0_i32 : i32
    %c0_i32_1 = arith.constant 0 : i32
    %c0_i32_2 = arith.constant 0 : i32
    return %arg0, %arg2, %2, %c0_i32_1 : i32, i32, i32, i32
  }
  func.func @transform_2(%arg0: i32, %arg1: i32, %arg2: i32) -> (i32, i32, i32, i32) {
    %c1_i32 = arith.constant 1 : i32
    %0 = arith.addi %arg1, %c1_i32 : i32
    %c1_i32_0 = arith.constant 1 : i32
    %1 = arith.muli %0, %c1_i32_0 : i32
    %c1_i32_1 = arith.constant 1 : i32
    %2 = arith.minsi %1, %c1_i32_1 : i32
    %c0_i32 = arith.constant 0 : i32
    %c0_i32_2 = arith.constant 0 : i32
    return %arg0, %arg2, %2, %c0_i32 : i32, i32, i32, i32
  }
  func.func @transform_3(%arg0: i32, %arg1: i32, %arg2: i32) -> (i32, i32, i32, i32) {
    %c0_i32 = arith.constant 0 : i32
    %c0_i32_0 = arith.constant 0 : i32
    %c0_i32_1 = arith.constant 0 : i32
    return %arg0, %c0_i32, %arg1, %c0_i32_0 : i32, i32, i32, i32
  }
  func.func @transform_4(%arg0: i32, %arg1: i32, %arg2: i32) -> (i32, i32, i32, i32) {
    %c0_i32 = arith.constant 0 : i32
    %c0_i32_0 = arith.constant 0 : i32
    %c0_i32_1 = arith.constant 0 : i32
    return %arg0, %c0_i32, %arg1, %c0_i32_0 : i32, i32, i32, i32
  }
}

</mosaic_0001>

<llo_original>
// kernel: tpu_custom_call.1
$region0: #{tpu_custom_call.1}
  #allocation0 [shape = 'u32[]', space=smem, size = 0x4, offset = 0x4, fixed_abs, tag = 'smem constant byte address 0x4 - core index']
  #allocation1 [shape = 'u32[72,128]{1,0:T(1,128)}', space=vmem, size = 0x9000, scoped, tag = 'internal scratch']
  #allocation2 [shape = 'f32[10,32]{1,0:T(8,128)}', space=vmem, size = 0x2000, scoped, tag = 'scratch operand']
  #allocation3 [shape = 's32[10,32]{1,0:T(8,128)}', space=vmem, size = 0x2000, scoped, tag = 'scratch operand']
  %s0 = inlined_call_operand.hbm [shape: f32[1,4,16,32], index: 0, kind: input, shape index: {}]
  %s1 = inlined_call_operand.hbm [shape: f32[1,4,16,32], index: 1, kind: input, shape index: {}]
  %s2 = inlined_call_operand.hbm [shape: f32[1,4,16,32], index: 2, kind: input, shape index: {}]
  %s3 = inlined_call_operand.hbm [shape: f32[1,1,16,32], index: 3, kind: output, shape index: {0}]
  %s4 = inlined_call_operand.hbm [shape: s32[1,1,16,32], index: 4, kind: output, shape index: {1}]
  %5 = xla_tuple %s3, %s4
  %s6 = sld [smem:[#allocation0]]
  $region89: #{tpu_custom_call.1} parent=0
    _
  %s8 = ssub.s32 1, %s6
  %s9 = scalar_select 0, %s8, %s6
  $region1: #{tpu_custom_call.1} parent=0
    #allocation4 [shape = 'u8[8192]{0}', space=vmem, size = 0x2000, scoped, tag = 'input window, operand 0']
    #allocation5 [shape = 's32[2]{0}', space=sflag, size = 0x8, scoped, tag = 'scoped memory for tpu_custom_call.1']
    #allocation6 [shape = 's32[2]{0}', space=sflag, size = 0x8, scoped, tag = 'scoped memory for tpu_custom_call.1']
    #allocation7 [shape = 'u8[8192]{0}', space=vmem, size = 0x2000, scoped, tag = 'input window, operand 1']
    #allocation8 [shape = 's32[2]{0}', space=sflag, size = 0x8, scoped, tag = 'scoped memory for tpu_custom_call.1']
    #allocation9 [shape = 'u8[8192]{0}', space=vmem, size = 0x2000, scoped, tag = 'input window, operand 2']
    #allocation10 [shape = 'u8[8192]{0}', space=vmem, size = 0x2000, scoped, tag = 'output window, operand 0']
    #allocation11 [shape = 'u8[8192]{0}', space=vmem, size = 0x2000, scoped, tag = 'output window, operand 1']
    #allocation12 [shape = 's32[2]{0}', space=sflag, size = 0x8, scoped, tag = 'scoped memory for tpu_custom_call.1']
    %10 = vsyncpa [#allocation5], 0
    %s11 = scalar_lea.sflag [#allocation5], 1
    %12 = vsyncpa %s11, 0
    %13 = vsyncpa [#allocation8], 0
    %s14 = scalar_lea.sflag [#allocation8], 1
    %15 = vsyncpa %s14, 0
    %16 = vsyncpa [#allocation6], 0
    %s17 = scalar_lea.sflag [#allocation6], 1
    %18 = vsyncpa %s17, 0
    %19 = vsyncpa [#allocation12], 0
    %s20 = scalar_lea.sflag [#allocation12], 1
    %21 = vsyncpa %s20, 0
    loop: start=0, step=1, limit=10
    $region2: #{tpu_custom_call.1} parent=1 // loop_pre_header
      _
    $region3: #{tpu_custom_call.1} parent=1 // loop_header
      %s23 = sphi 0, %s27
      %p24 = scmp.ge.s32.totalorder %s23, 10
      %s30 = sphi 0, %s49
      %s31 = sphi 0, %s45
      %s32 = sphi 0, %s41
      %s33 = sphi 0, %s30
      %s34 = sphi 0, %s31
      %s35 = sphi 0, %s32
      %s36 = sphi 0, %s33
      %s37 = sphi 0, %s34
      %s38 = sphi 0, %s35
      %s56 = sphi 0, %s58
      %s59 = sphi 0, %s56
      %s60 = sphi 0, %s59
      %s76 = sphi 0, %s60
      %s92 = sphi 0, %s94
      %s95 = sphi 0, %s92
      %s96 = sphi 0, %s95
      %s112 = sphi 0, %s96
      %s128 = sphi 0, %s130
      %s131 = sphi 0, %s128
      %s132 = sphi 0, %s131
      %s148 = sphi 0, %s132
      %s156 = sphi 0, %s158
      %s159 = sphi 0, %s156
      %s160 = sphi 0, %s159
      %s176 = sphi 0, %s160
      %s184 = sphi 0, %s186
      %s187 = sphi 0, %s184
      %s188 = sphi 0, %s187
      %s204 = sphi 0, %s188
    $region4: #{tpu_custom_call.1} parent=1 // loop_header_branch
      %26 = sbr.rel (%p24) target = $region8
    $region5: #{tpu_custom_call.1} parent=1 // loop_body
      %s28 = ssub.s32 %s23, 1
      %s29 = ssub.s32 %s23, 2
      %s39 = sadd.s32 1, %s32
      %p40 = scmp.ge.s32.totalorder %s39, 4
      %s41 = scalar_select %p40, 0, %s39
      %s42 = sadd.s32 1, %s31
      %s43 = scalar_select %p40, %s42, %s31
      %p44 = scmp.ge.s32.totalorder %s43, 2
      %s45 = scalar_select %p44, 0, %s43
      %s46 = sadd.s32 1, %s30
      %s47 = scalar_select %p44, %s46, %s30
      %p48 = scmp.ge.s32.totalorder %s47, 1
      %s49 = scalar_select %p48, 0, %s47
      %s50 = ssub.s32 %s30, %s49
      %s51 = ssub.s32 %s32, %s41
      %s52 = sor.u32 %s50, %s51
      %s53 = ssub.s32 %s31, %s45
      %s54 = sor.u32 %s52, %s53
      %p55 = scmp.eq.s32.totalorder %s54, 0
      %s57 = sadd.s32 %s56, 1
      %s58 = scalar_select %p55, %s56, %s57
      %p61 = pneg %p55
      %p62 = scmp.eq.s32.totalorder %s23, 7
      %p63 = por %p61, %p62
      %p64 = scmp.ne.s32.totalorder %s56, %s59
      %p65 = scmp.eq.s32.totalorder %s23, 0
      %p66 = por %p64, %p65
      %p67 = scmp.ne.s32.totalorder %s56, %s59
      %p68 = scmp.eq.s32.totalorder %s28, 7
      %p69 = por %p67, %p68
      %p70 = scmp.ne.s32.totalorder %s59, %s60
      %p71 = scmp.eq.s32.totalorder %s28, 0
      %p72 = por %p70, %p71
      %p73 = scmp.ne.s32.totalorder %s59, %s60
      %p74 = scmp.eq.s32.totalorder %s29, 7
      %p75 = por %p73, %p74
      %p77 = scmp.ne.s32.totalorder %s60, %s76
      %p78 = scmp.eq.s32.totalorder %s29, 0
      %p79 = por %p77, %p78
      %s80 = ssub.s32 %s31, 1
      %p81 = scmp.gt.s32.totalorder %s80, 0
      %s82 = scalar_select %p81, %s80, 0
      %s83 = ssub.s32 %s45, 1
      %p84 = scmp.gt.s32.totalorder %s83, 0
      %s85 = scalar_select %p84, %s83, 0
      %s86 = ssub.s32 %s30, %s49
      %s87 = ssub.s32 %s32, %s41
      %s88 = sor.u32 %s86, %s87
      %s89 = ssub.s32 %s82, %s85
      %s90 = sor.u32 %s88, %s89
      %p91 = scmp.eq.s32.totalorder %s90, 0
      %s93 = sadd.s32 %s92, 1
      %s94 = scalar_select %p91, %s92, %s93
      %p97 = pneg %p91
      %p98 = scmp.eq.s32.totalorder %s23, 7
      %p99 = por %p97, %p98
      %p100 = scmp.ne.s32.totalorder %s92, %s95
      %p101 = scmp.eq.s32.totalorder %s23, 0
      %p102 = por %p100, %p101
      %p103 = scmp.ne.s32.totalorder %s92, %s95
      %p104 = scmp.eq.s32.totalorder %s28, 7
      %p105 = por %p103, %p104
      %p106 = scmp.ne.s32.totalorder %s95, %s96
      %p107 = scmp.eq.s32.totalorder %s28, 0
      %p108 = por %p106, %p107
      %p109 = scmp.ne.s32.totalorder %s95, %s96
      %p110 = scmp.eq.s32.totalorder %s29, 7
      %p111 = por %p109, %p110
      %p113 = scmp.ne.s32.totalorder %s96, %s112
      %p114 = scmp.eq.s32.totalorder %s29, 0
      %p115 = por %p113, %p114
      %s116 = sadd.s32 %s31, 1
      %p117 = scmp.lt.s32.totalorder %s116, 1
      %s118 = scalar_select %p117, %s116, 1
      %s119 = sadd.s32 %s45, 1
      %p120 = scmp.lt.s32.totalorder %s119, 1
      %s121 = scalar_select %p120, %s119, 1
      %s122 = ssub.s32 %s30, %s49
      %s123 = ssub.s32 %s32, %s41
      %s124 = sor.u32 %s122, %s123
      %s125 = ssub.s32 %s118, %s121
      %s126 = sor.u32 %s124, %s125
      %p127 = scmp.eq.s32.totalorder %s126, 0
      %s129 = sadd.s32 %s128, 1
      %s130 = scalar_select %p127, %s128, %s129
      %p133 = pneg %p127
      %p134 = scmp.eq.s32.totalorder %s23, 7
      %p135 = por %p133, %p134
      %p136 = scmp.ne.s32.totalorder %s128, %s131
      %p137 = scmp.eq.s32.totalorder %s23, 0
      %p138 = por %p136, %p137
      %p139 = scmp.ne.s32.totalorder %s128, %s131
      %p140 = scmp.eq.s32.totalorder %s28, 7
      %p141 = por %p139, %p140
      %p142 = scmp.ne.s32.totalorder %s131, %s132
      %p143 = scmp.eq.s32.totalorder %s28, 0
      %p144 = por %p142, %p143
      %p145 = scmp.ne.s32.totalorder %s131, %s132
      %p146 = scmp.eq.s32.totalorder %s29, 7
      %p147 = por %p145, %p146
      %p149 = scmp.ne.s32.totalorder %s132, %s148
      %p150 = scmp.eq.s32.totalorder %s29, 0
      %p151 = por %p149, %p150
      %s152 = ssub.s32 %s30, %s49
      %s153 = ssub.s32 %s31, %s45
      %s154 = sor.u32 %s152, %s153
      %p155 = scmp.eq.s32.totalorder %s154, 0
      %s157 = sadd.s32 %s156, 1
      %s158 = scalar_select %p155, %s156, %s157
      %p161 = pneg %p155
      %p162 = scmp.eq.s32.totalorder %s23, 7
      %p163 = por %p161, %p162
      %p164 = scmp.ne.s32.totalorder %s156, %s159
      %p165 = scmp.eq.s32.totalorder %s23, 0
      %p166 = por %p164, %p165
      %p167 = scmp.ne.s32.totalorder %s156, %s159
      %p168 = scmp.eq.s32.totalorder %s28, 7
      %p169 = por %p167, %p168
      %p170 = scmp.ne.s32.totalorder %s159, %s160
      %p171 = scmp.eq.s32.totalorder %s28, 0
      %p172 = por %p170, %p171
      %p173 = scmp.ne.s32.totalorder %s159, %s160
      %p174 = scmp.eq.s32.totalorder %s29, 7
      %p175 = por %p173, %p174
      %p177 = scmp.ne.s32.totalorder %s160, %s176
      %p178 = scmp.eq.s32.totalorder %s29, 0
      %p179 = por %p177, %p178
      %s180 = ssub.s32 %s30, %s49
      %s181 = ssub.s32 %s31, %s45
      %s182 = sor.u32 %s180, %s181
      %p183 = scmp.eq.s32.totalorder %s182, 0
      %s185 = sadd.s32 %s184, 1
      %s186 = scalar_select %p183, %s184, %s185
      %p189 = pneg %p183
      %p190 = scmp.eq.s32.totalorder %s23, 7
      %p191 = por %p189, %p190
      %p192 = scmp.ne.s32.totalorder %s184, %s187
      %p193 = scmp.eq.s32.totalorder %s23, 0
      %p194 = por %p192, %p193
      %p195 = scmp.ne.s32.totalorder %s184, %s187
      %p196 = scmp.eq.s32.totalorder %s28, 7
      %p197 = por %p195, %p196
      %p198 = scmp.ne.s32.totalorder %s187, %s188
      %p199 = scmp.eq.s32.totalorder %s28, 0
      %p200 = por %p198, %p199
      %p201 = scmp.ne.s32.totalorder %s187, %s188
      %p202 = scmp.eq.s32.totalorder %s29, 7
      %p203 = por %p201, %p202
      %p205 = scmp.ne.s32.totalorder %s188, %s204
      %p206 = scmp.eq.s32.totalorder %s29, 0
      %p207 = por %p205, %p206
      %p208 = scmp.le.s32.totalorder 1, %s23
      %p209 = scmp.lt.s32.totalorder %s23, 9
      %p210 = pnand %p208, %p209
      %p211 = pneg %p210
      // Predicated region
      $region9: #{tpu_custom_call.1} parent=5 // pred_check
        _
      $region10: #{tpu_custom_call.1} parent=5 // pred_check_branch
        %213 = sbr.rel (%p210) target = $region12
      $region11: #{tpu_custom_call.1} parent=5 // pred_region
        %s214 = ssub.s32 %s23, 1
      $region12: #{tpu_custom_call.1} parent=5 // pred_fallthru
        _
      %p215 = scmp.lt.s32.totalorder %s23, 8
      // Predicated region
      $region13: #{tpu_custom_call.1} parent=5 // pred_check
        %p216 = pneg %p215
      $region14: #{tpu_custom_call.1} parent=5 // pred_check_branch
        %218 = sbr.rel (%p216) target = $region16
      $region15: #{tpu_custom_call.1} parent=5 // pred_region
        // Predicated region
        $region17: #{tpu_custom_call.1} parent=15 // pred_check
          %p219 = pneg %p66
        $region18: #{tpu_custom_call.1} parent=15 // pred_check_branch
          %221 = sbr.rel (%p219) target = $region20
        $region19: #{tpu_custom_call.1} parent=15 // pred_region
          %s222 = sand.u32 %s56, 1
          %s223 = scalar_lea.sflag [#allocation5], %s222
          %s224 = sand.u32 %s56, 1
          %s225 = smul.addr %s224, 8
          %s226 = scalar_lea.vmem [#allocation4], %s225
          %228 = vsyncadd %s223, 0
          %s229 = smul.addr %s32, 2
          %s230 = sadd.s32 %s31, %s229
          %s231 = smul.addr %s30, 8
          %s232 = sadd.s32 %s230, %s231
          %s233 = smul.addr %s232, 8
          %s234 = scalar_lea.hbm %s0, %s233
          %s236 = sshll.u32 %s234, 4
          %s237 = int_to_ptr.hbm [resolvable:$true] %s236
          %s238 = sshll.u32 %s226, 4
          %s239 = int_to_ptr.vmem [resolvable:$true] %s238
          %241 = dma.hbm_to_vmem [thread:$0]  %s237, 128, %s239, %s223
        $region20: #{tpu_custom_call.1} parent=15 // pred_fallthru
          _
        // Predicated region
        $region21: #{tpu_custom_call.1} parent=15 // pred_check
          %p242 = pneg %p102
        $region22: #{tpu_custom_call.1} parent=15 // pred_check_branch
          %244 = sbr.rel (%p242) target = $region24
        $region23: #{tpu_custom_call.1} parent=15 // pred_region
          %s245 = sand.u32 %s23, 1
          %s246 = scalar_lea.sflag [#allocation8], %s245
          %s247 = sand.u32 %s92, 1
          %s248 = smul.addr %s247, 8
          %s249 = scalar_lea.vmem [#allocation7], %s248
          %s250 = ssub.s32 %s31, 1
          %p251 = scmp.gt.s32.totalorder %s250, 0
          %s252 = scalar_select %p251, %s250, 0
          %254 = vsyncadd %s246, 0
          %s255 = smul.addr %s32, 2
          %s256 = sadd.s32 %s252, %s255
          %s257 = smul.addr %s30, 8
          %s258 = sadd.s32 %s256, %s257
          %s259 = smul.addr %s258, 8
          %s260 = scalar_lea.hbm %s1, %s259
          %s262 = sshll.u32 %s260, 4
          %s263 = int_to_ptr.hbm [resolvable:$true] %s262
          %s264 = sshll.u32 %s249, 4
          %s265 = int_to_ptr.vmem [resolvable:$true] %s264
          %267 = dma.hbm_to_vmem [thread:$0]  %s263, 128, %s265, %s246
        $region24: #{tpu_custom_call.1} parent=15 // pred_fallthru
          _
        // Predicated region
        $region25: #{tpu_custom_call.1} parent=15 // pred_check
          %p268 = pneg %p138
        $region26: #{tpu_custom_call.1} parent=15 // pred_check_branch
          %270 = sbr.rel (%p268) target = $region28
        $region27: #{tpu_custom_call.1} parent=15 // pred_region
          %s271 = sand.u32 %s23, 1
          %s272 = scalar_lea.sflag [#allocation8], %s271
          %s273 = sand.u32 %s128, 1
          %s274 = smul.addr %s273, 8
          %s275 = scalar_lea.vmem [#allocation9], %s274
          %s276 = sadd.s32 %s31, 1
          %p277 = scmp.lt.s32.totalorder %s276, 1
          %s278 = scalar_select %p277, %s276, 1
          %280 = vsyncadd %s272, 0
          %s281 = smul.addr %s32, 2
          %s282 = sadd.s32 %s278, %s281
          %s283 = smul.addr %s30, 8
          %s284 = sadd.s32 %s282, %s283
          %s285 = smul.addr %s284, 8
          %s286 = scalar_lea.hbm %s2, %s285
          %s288 = sshll.u32 %s286, 4
          %s289 = int_to_ptr.hbm [resolvable:$true] %s288
          %s290 = sshll.u32 %s275, 4
          %s291 = int_to_ptr.vmem [resolvable:$true] %s290
          %293 = dma.hbm_to_vmem [thread:$0]  %s289, 128, %s291, %s272
        $region28: #{tpu_custom_call.1} parent=15 // pred_fallthru
          _
      $region16: #{tpu_custom_call.1} parent=5 // pred_fallthru
        _
      %p294 = scmp.le.s32.totalorder 1, %s23
      %p295 = scmp.lt.s32.totalorder %s23, 9
      %p296 = pnand %p294, %p295
      %p297 = pneg %p296
      // Predicated region
      $region29: #{tpu_custom_call.1} parent=5 // pred_check
        _
      $region30: #{tpu_custom_call.1} parent=5 // pred_check_branch
        %299 = sbr.rel (%p296) target = $region32
      $region31: #{tpu_custom_call.1} parent=5 // pred_region
        %s300 = ssub.s32 %s23, 1
        %s301 = sand.u32 %s59, 1
        %s302 = scalar_lea.sflag [#allocation5], %s301
        %s303 = sand.u32 %s59, 1
        %s304 = smul.addr %s303, 8
        %s305 = scalar_lea.vmem [#allocation4], %s304
        // Predicated region
        $region33: #{tpu_custom_call.1} parent=31 // pred_check
          %p306 = pneg %p72
        $region34: #{tpu_custom_call.1} parent=31 // pred_check_branch
          %308 = sbr.rel (%p306) target = $region36
        $region35: #{tpu_custom_call.1} parent=31 // pred_region
          %310 = dma.done %s302, 128
        $region36: #{tpu_custom_call.1} parent=31 // pred_fallthru
          _
        %s311 = sand.u32 %s28, 1
        %s312 = scalar_lea.sflag [#allocation8], %s311
        %s313 = sand.u32 %s95, 1
        %s314 = smul.addr %s313, 8
        %s315 = scalar_lea.vmem [#allocation7], %s314
        // Predicated region
        $region37: #{tpu_custom_call.1} parent=31 // pred_check
          %p316 = pneg %p108
        $region38: #{tpu_custom_call.1} parent=31 // pred_check_branch
          %318 = sbr.rel (%p316) target = $region40
        $region39: #{tpu_custom_call.1} parent=31 // pred_region
          %320 = dma.done %s312, 128
        $region40: #{tpu_custom_call.1} parent=31 // pred_fallthru
          _
        %s321 = sand.u32 %s28, 1
        %s322 = scalar_lea.sflag [#allocation8], %s321
        %s323 = sand.u32 %s131, 1
        %s324 = smul.addr %s323, 8
        %s325 = scalar_lea.vmem [#allocation9], %s324
        // Predicated region
        $region41: #{tpu_custom_call.1} parent=31 // pred_check
          %p326 = pneg %p144
        $region42: #{tpu_custom_call.1} parent=31 // pred_check_branch
          %328 = sbr.rel (%p326) target = $region44
        $region43: #{tpu_custom_call.1} parent=31 // pred_region
          %330 = dma.done %s322, 128
        $region44: #{tpu_custom_call.1} parent=31 // pred_fallthru
          _
        %s331 = sand.u32 %s59, 1
        %s332 = scalar_lea.sflag [#allocation5], %s331
        %s333 = sand.u32 %s59, 1
        %s334 = smul.addr %s333, 8
        %s335 = scalar_lea.vmem [#allocation4], %s334
        %p336 = pneg %p72
        %p337 = pneg %p69
        %s338 = sand.u32 %s28, 1
        %s339 = scalar_lea.sflag [#allocation8], %s338
        %s340 = sand.u32 %s95, 1
        %s341 = smul.addr %s340, 8
        %s342 = scalar_lea.vmem [#allocation7], %s341
        %p343 = pneg %p108
        %p344 = pneg %p105
        %s345 = sand.u32 %s28, 1
        %s346 = scalar_lea.sflag [#allocation8], %s345
        %s347 = sand.u32 %s131, 1
        %s348 = smul.addr %s347, 8
        %s349 = scalar_lea.vmem [#allocation9], %s348
        %p350 = pneg %p144
        %p351 = pneg %p141
        %p352 = pneg %p172
        %p353 = pneg %p169
        %s354 = sand.u32 %s159, 1
        %s355 = scalar_lea.sflag [#allocation6], %s354
        %s356 = sand.u32 %s159, 1
        %s357 = smul.addr %s356, 8
        %s358 = scalar_lea.vmem [#allocation10], %s357
        %p359 = pneg %p200
        %p360 = pneg %p197
        %s361 = sand.u32 %s187, 1
        %s362 = scalar_lea.sflag [#allocation12], %s361
        %s363 = sand.u32 %s187, 1
        %s364 = smul.addr %s363, 8
        %s365 = scalar_lea.vmem [#allocation11], %s364
        %s366 = ssub.s32 %s34, 1
        %p367 = scmp.gt.s32.totalorder %s366, 0
        %s368 = scalar_select %p367, %s366, 0
        %s369 = sadd.s32 %s34, 1
        %p370 = scmp.lt.s32.totalorder %s369, 1
        %s371 = scalar_select %p370, %s369, 1
        %v372 = vlaneseq
        %v373 = vand.u32 %v372, 127
        %v374 = vand.u32 %v373, 15
        %vm375 = vcmp.ge.s32.totalorder %v374, 1
        %vm376 = vcmp.lt.s32.totalorder %v374, 15
        %v377 = vld [vmem:[%s305] sm:$0xff]
        %vm378 = vcmask 1047808
        %379 = vrot.lane.b32.xlu0 %v377, 32
        %v380 = vpop.permute.xlu0 %379
        %v381 = vsel %vm378, %v380, %v377
        %382 = vrot.lane.b32.xlu0 %v381, 32
        %v383 = vpop.permute.xlu0 %382
        %v384 = vsel %vm378, %v383, %v377
        %v385 = vsel %vm375, 1, 0
        %vm386 = vcmp.eq.s32.totalorder %v385, 1
        %388 = vrot.lane.b32.xlu0 %v384, 97
        %v389 = vpop.permute.xlu0 %388
        %v391 = vsel %vm386, %v389, 0.0
        %vm392 = vcmp.lt.f32.partialorder %v377, %v391
        %v393 = vsel %vm392, %v377, %v391
        %v394 = vsel %vm392, 1, 0
        %v395 = vsel %vm376, 1, 0
        %vm396 = vcmp.eq.s32.totalorder %v395, 1
        %397 = vrot.lane.b32.xlu0 %v384, 127
        %v398 = vpop.permute.xlu0 %397
        %v400 = vsel %vm396, %v398, 0.0
        %vm401 = vcmp.lt.f32.partialorder %v400, %v393
        %v402 = vsel %vm401, %v400, %v393
        %v403 = vsel %vm401, 2, %v394
        %vm404 = vcmask 261120
        %405 = vst.msk [vmem:[#allocation2 + $0x1] sm:$0xff] %vm404, %v402
        %406 = vst.msk [vmem:[#allocation3 + $0x1] sm:$0xff] %vm404, %v403
        %p407 = scmp.gt.s32.totalorder %s34, 0
        // Predicated region
        $region45: #{tpu_custom_call.1} parent=31 // pred_check
          %p408 = pneg %p407
        $region46: #{tpu_custom_call.1} parent=31 // pred_check_branch
          %410 = sbr.rel (%p408) target = $region48
        $region47: #{tpu_custom_call.1} parent=31 // pred_region
          %v411 = vld [vmem:[%s315 + $0x7] sm:$0x1]
          %412 = vrot.lane.b32.xlu0 %v411, 32
          %v413 = vpop.permute.xlu0 %412
          %v414 = vsel %vm378, %v413, %v411
          %415 = vrot.lane.b32.xlu0 %v414, 32
          %v416 = vpop.permute.xlu0 %415
          %v417 = vsel %vm378, %v416, %v411
          %419 = vrot.lane.b32.xlu0 %v417, 97
          %v420 = vpop.permute.xlu0 %419
          %v422 = vsel %vm375, %v420, 0.0
          %vm423 = vcmp.lt.f32.partialorder %v411, %v422
          %v424 = vsel %vm423, %v411, %v422
          %v425 = vsel %vm423, 1, 0
          %426 = vrot.lane.b32.xlu0 %v417, 127
          %v427 = vpop.permute.xlu0 %426
          %v429 = vsel %vm376, %v427, 0.0
          %vm430 = vcmp.lt.f32.partialorder %v429, %v424
          %v431 = vsel %vm430, %v429, %v424
          %v432 = vsel %vm430, 2, %v425
          %vm433 = vcmask 253952
          %434 = vst.msk [vmem:[#allocation2] sm:$0x1] %vm433, %v431
          %435 = vst.msk [vmem:[#allocation3] sm:$0x1] %vm433, %v432
        $region48: #{tpu_custom_call.1} parent=31 // pred_fallthru
          _
        %p436 = scmp.eq.s32.totalorder %s34, 0
        %p437 = scmp.eq.s32.totalorder %s35, 0
        %p438 = pnand %p436, %p437
        %p439 = pneg %p438
        // Predicated region
        $region49: #{tpu_custom_call.1} parent=31 // pred_check
          _
        $region50: #{tpu_custom_call.1} parent=31 // pred_check_branch
          %441 = sbr.rel (%p438) target = $region52
        $region51: #{tpu_custom_call.1} parent=31 // pred_region
          %vm442 = vcmask 253952
          %443 = vst.msk [vmem:[#allocation2] sm:$0x1] %vm442, 0.0
          %444 = vst.msk [vmem:[#allocation3] sm:$0x1] %vm442, 0
        $region52: #{tpu_custom_call.1} parent=31 // pred_fallthru
          _
        %p445 = scmp.lt.s32.totalorder %s34, 1
        // Predicated region
        $region53: #{tpu_custom_call.1} parent=31 // pred_check
          %p446 = pneg %p445
        $region54: #{tpu_custom_call.1} parent=31 // pred_check_branch
          %448 = sbr.rel (%p446) target = $region56
        $region55: #{tpu_custom_call.1} parent=31 // pred_region
          %v449 = vld [vmem:[%s325] sm:$0x1]
          %450 = vrot.lane.b32.xlu0 %v449, 32
          %v451 = vpop.permute.xlu0 %450
          %v452 = vsel %vm378, %v451, %v449
          %453 = vrot.lane.b32.xlu0 %v452, 32
          %v454 = vpop.permute.xlu0 %453
          %v455 = vsel %vm378, %v454, %v449
          %457 = vrot.lane.b32.xlu0 %v455, 97
          %v458 = vpop.permute.xlu0 %457
          %v460 = vsel %vm375, %v458, 0.0
          %vm461 = vcmp.lt.f32.partialorder %v449, %v460
          %v462 = vsel %vm461, %v449, %v460
          %v463 = vsel %vm461, 1, 0
          %464 = vrot.lane.b32.xlu0 %v455, 127
          %v465 = vpop.permute.xlu0 %464
          %v467 = vsel %vm376, %v465, 0.0
          %vm468 = vcmp.lt.f32.partialorder %v467, %v462
          %v469 = vsel %vm468, %v467, %v462
          %v470 = vsel %vm468, 2, %v463
          %vm471 = vcmask 253952
          %472 = vst.msk [vmem:[#allocation2 + $0x9] sm:$0x1] %vm471, %v469
          %473 = vst.msk [vmem:[#allocation3 + $0x9] sm:$0x1] %vm471, %v470
        $region56: #{tpu_custom_call.1} parent=31 // pred_fallthru
          _
        %p474 = scmp.eq.s32.totalorder %s34, 1
        %p475 = pnand %p474, %p437
        %p476 = pneg %p475
        // Predicated region
        $region57: #{tpu_custom_call.1} parent=31 // pred_check
          _
        $region58: #{tpu_custom_call.1} parent=31 // pred_check_branch
          %478 = sbr.rel (%p475) target = $region60
        $region59: #{tpu_custom_call.1} parent=31 // pred_region
          %vm479 = vcmask 253952
          %480 = vst.msk [vmem:[#allocation2 + $0x9] sm:$0x1] %vm479, 0.0
          %481 = vst.msk [vmem:[#allocation3 + $0x9] sm:$0x1] %vm479, 0
        $region60: #{tpu_custom_call.1} parent=31 // pred_fallthru
          _
        %v482 = vld [vmem:[#allocation2] sm:$0xff]
        %v483 = vld [vmem:[#allocation3] sm:$0xff]
        %v484 = vld [vmem:[#allocation2 + $0x1] sm:$0xff]
        %v485 = vld [vmem:[#allocation3 + $0x1] sm:$0xff]
        %v486 = vadd.s32 %v485, 3
        %vm487 = vcmp.lt.f32.partialorder %v484, %v482
        %v488 = vsel %vm487, %v484, %v482
        %v489 = vsel %vm487, %v486, %v483
        %v490 = vld [vmem:[#allocation2 + $0x2] sm:$0xff]
        %v491 = vld [vmem:[#allocation3 + $0x2] sm:$0xff]
        %v492 = vadd.s32 %v491, 6
        %vm493 = vcmp.lt.f32.partialorder %v490, %v488
        %v494 = vsel %vm493, %v490, %v488
        %v495 = vsel %vm493, %v492, %v489
        // Predicated region
        $region61: #{tpu_custom_call.1} parent=31 // pred_check
          %p496 = pneg %p437
        $region62: #{tpu_custom_call.1} parent=31 // pred_check_branch
          %498 = sbr.rel (%p496) target = $region64
        $region63: #{tpu_custom_call.1} parent=31 // pred_region
          %499 = vst.msk [vmem:[%s358] sm:$0xff] %vm404, %v494
          %500 = vst.msk [vmem:[%s365] sm:$0xff] %vm404, %v495
        $region64: #{tpu_custom_call.1} parent=31 // pred_fallthru
          _
        %p501 = scmp.gt.s32.totalorder %s35, 0
        // Predicated region
        $region65: #{tpu_custom_call.1} parent=31 // pred_check
          %p502 = pneg %p501
        $region66: #{tpu_custom_call.1} parent=31 // pred_check_branch
          %504 = sbr.rel (%p502) target = $region68
        $region67: #{tpu_custom_call.1} parent=31 // pred_region
          %v505 = vld [vmem:[%s358] sm:$0xff]
          %v506 = vld [vmem:[%s365] sm:$0xff]
          %vm507 = vcmp.lt.f32.partialorder %v494, %v505
          %v508 = vsel %vm507, %v494, %v505
          %509 = vst.msk [vmem:[%s358] sm:$0xff] %vm404, %v508
          %s510 = smul.u32 %s35, 9
          %v511 = vstv %s510
          %v512 = vadd.s32 %v495, %v511
          %v513 = vsel %vm507, %v512, %v506
          %514 = vst.msk [vmem:[%s365] sm:$0xff] %vm404, %v513
        $region68: #{tpu_custom_call.1} parent=31 // pred_fallthru
          _
        %s515 = sand.u32 %s159, 1
        %s516 = scalar_lea.sflag [#allocation6], %s515
        %s517 = sand.u32 %s159, 1
        %s518 = smul.addr %s517, 8
        %s519 = scalar_lea.vmem [#allocation10], %s518
        %s520 = sand.u32 %s187, 1
        %s521 = scalar_lea.sflag [#allocation12], %s520
        %s522 = sand.u32 %s187, 1
        %s523 = smul.addr %s522, 8
        %s524 = scalar_lea.vmem [#allocation11], %s523
        // Predicated region
        $region69: #{tpu_custom_call.1} parent=31 // pred_check
          %p525 = pneg %p169
        $region70: #{tpu_custom_call.1} parent=31 // pred_check_branch
          %527 = sbr.rel (%p525) target = $region72
        $region71: #{tpu_custom_call.1} parent=31 // pred_region
          %529 = vsyncadd %s516, 0
          %s530 = smul.addr %s33, 2
          %s531 = sadd.s32 %s34, %s530
          %s532 = smul.addr %s531, 8
          %s533 = scalar_lea.hbm %s3, %s532
          %s535 = sshll.u32 %s519, 4
          %s536 = int_to_ptr.vmem [resolvable:$true] %s535
          %s537 = sshll.u32 %s533, 4
          %s538 = int_to_ptr.hbm [resolvable:$true] %s537
          %540 = dma.vmem_to_hbm [thread:$0]  %s536, 128, %s538, %s516
        $region72: #{tpu_custom_call.1} parent=31 // pred_fallthru
          _
        // Predicated region
        $region73: #{tpu_custom_call.1} parent=31 // pred_check
          %p541 = pneg %p197
        $region74: #{tpu_custom_call.1} parent=31 // pred_check_branch
          %543 = sbr.rel (%p541) target = $region76
        $region75: #{tpu_custom_call.1} parent=31 // pred_region
          %545 = vsyncadd %s521, 0
          %s546 = smul.addr %s33, 2
          %s547 = sadd.s32 %s34, %s546
          %s548 = smul.addr %s547, 8
          %s549 = scalar_lea.hbm %s4, %s548
          %s551 = sshll.u32 %s524, 4
          %s552 = int_to_ptr.vmem [resolvable:$true] %s551
          %s553 = sshll.u32 %s549, 4
          %s554 = int_to_ptr.hbm [resolvable:$true] %s553
          %556 = dma.vmem_to_hbm [thread:$0]  %s552, 128, %s554, %s521
        $region76: #{tpu_custom_call.1} parent=31 // pred_fallthru
          _
      $region32: #{tpu_custom_call.1} parent=5 // pred_fallthru
        _
      %p557 = scmp.le.s32.totalorder 2, %s23
      // Predicated region
      $region77: #{tpu_custom_call.1} parent=5 // pred_check
        %p558 = pneg %p557
      $region78: #{tpu_custom_call.1} parent=5 // pred_check_branch
        %560 = sbr.rel (%p558) target = $region80
      $region79: #{tpu_custom_call.1} parent=5 // pred_region
        %s561 = ssub.s32 %s23, 2
        // Predicated region
        $region81: #{tpu_custom_call.1} parent=79 // pred_check
          %p562 = pneg %p175
        $region82: #{tpu_custom_call.1} parent=79 // pred_check_branch
          %564 = sbr.rel (%p562) target = $region84
        $region83: #{tpu_custom_call.1} parent=79 // pred_region
          %s565 = sand.u32 %s160, 1
          %s566 = scalar_lea.sflag [#allocation6], %s565
          %s567 = sand.u32 %s160, 1
          %s568 = smul.addr %s567, 8
          %s569 = scalar_lea.vmem [#allocation10], %s568
          %571 = dma.done %s566, 128
        $region84: #{tpu_custom_call.1} parent=79 // pred_fallthru
          _
        // Predicated region
        $region85: #{tpu_custom_call.1} parent=79 // pred_check
          %p572 = pneg %p203
        $region86: #{tpu_custom_call.1} parent=79 // pred_check_branch
          %574 = sbr.rel (%p572) target = $region88
        $region87: #{tpu_custom_call.1} parent=79 // pred_region
          %s575 = sand.u32 %s188, 1
          %s576 = scalar_lea.sflag [#allocation12], %s575
          %s577 = sand.u32 %s188, 1
          %s578 = smul.addr %s577, 8
          %s579 = scalar_lea.vmem [#allocation11], %s578
          %581 = dma.done %s576, 128
        $region88: #{tpu_custom_call.1} parent=79 // pred_fallthru
          _
      $region80: #{tpu_custom_call.1} parent=5 // pred_fallthru
        _
    $region6: #{tpu_custom_call.1} parent=1 // loop_footer
      %s27 = sadd.s32 1, %s23
    $region7: #{tpu_custom_call.1} parent=1 // loop_footer_branch
      %22 = sbr.rel target = $region3
    $region8: #{tpu_custom_call.1} parent=1 // loop_exit
      _
    %582 = vsyncpa [#allocation5], 1
    %s583 = scalar_lea.sflag [#allocation5], 1
    %584 = vsyncpa %s583, 1
    %585 = vsyncpa [#allocation8], 1
    %s586 = scalar_lea.sflag [#allocation8], 1
    %587 = vsyncpa %s586, 1
    %588 = vsyncpa [#allocation6], 1
    %s589 = scalar_lea.sflag [#allocation6], 1
    %590 = vsyncpa %s589, 1
    %591 = vsyncpa [#allocation12], 1
    %s592 = scalar_lea.sflag [#allocation12], 1
    %593 = vsyncpa %s592, 1

</llo_original>
